<compile_context>
chip_gen: v6e
topology: v6e:2x2x1
jax: 0.10.0
libtpu: 0.0.40
codegen_flags: <defaults>
</compile_context>

<pallas_src>
import functools

import jax
import jax.numpy as jnp
from jax.experimental import pallas as pl
from jax.experimental.pallas import tpu as pltpu


# 128 fills a vreg row and one MXU pass on every generation; profiling shows
# this kernel is HBM/overhead bound, so do NOT chase 256 on v6e/v7x.
LANE_TARGET = 128


def _round_up(n, m):
    return -(-n // m) * m


def _pick_tf(F, H, lane_target=LANE_TARGET):
    """Smallest divisor Tf of F with Tf*H a multiple of the lane target."""
    for tf in range(1, F + 1):
        if F % tf == 0 and (tf * H) % lane_target == 0:
            return tf
    # Fallback: one group; P is padded up to a lane multiple in packing so the
    # output stays lane-dense (no masked stores).
    return F


def _pick_tb(B, G, *, tb_cap=4096, v7x_split_min=2048):
    """Batch tile: large (overhead-amortizing) but never the whole huge batch."""
    tb = max(8, _round_up(min(B, tb_cap), 8))
    # v7x has 2 TensorCores: keep >= 2 grid steps along a parallel axis when
    # the feature axis alone can't provide them (harmless on v5e/v6e).
    if G == 1 and B >= v7x_split_min and pl.cdiv(B, tb) < 2:
        tb = max(8, _round_up(pl.cdiv(B, 2), 8))
    return tb


def _default_act_dtype():
    """bf16 bias/ReLU path on chips with bf16 VALUs (v6e, v7x); f32 otherwise."""
    try:
        kind = jax.devices()[0].device_kind.lower()
    except Exception:
        return jnp.float32
    if ("v6" in kind) or ("v7" in kind) or ("7x" in kind):
        return jnp.bfloat16
    return jnp.float32


def pack_embedding_params(params, *, act_dtype=jnp.float32,
                          lane_target=LANE_TARGET):
    """Pack per-feature MLP weights into block-diagonal per-group slabs.

    Returns (packed_arrays, meta).  Packed shapes (G = F//Tf, P0 = Tf*H,
    P = round_up(P0, 128), Kp = round_up(Tf, 8)):
      W0: [G, Kp, P] f32      b0: [G, 1, P]  act_dtype
      Wm: [G, L, P, P] bf16   bm: [G, L, 1, P] act_dtype
      Wl: [G, P, P] bf16      bl: [G, 1, P]  f32
    Off-diagonal / padded entries are exactly zero, so the packed matmuls
    reproduce the independent per-feature Linears.
    """
    w0, b0, wm, bm, wl, bl = params
    F, _, H = w0.shape
    num_mid = wm.shape[1]
    # TODO(synk): num_layers == 2 (no mid layers) not supported by this packing.
    assert num_mid >= 1

    Tf = _pick_tf(F, H, lane_target)
    G = F // Tf
    P0 = Tf * H
    P = _round_up(P0, 128)
    Kp = _round_up(Tf, 8)
    eye = jnp.eye(Tf, dtype=jnp.float32)

    # Layer 0: Linear(1, H) per feature -> block-diagonal [Tf, P0] per group.
    w0g = w0.reshape(G, Tf, H)
    W0 = (eye[None, :, :, None] * w0g[:, :, None, :]).reshape(G, Tf, P0)
    W0 = jnp.pad(W0, ((0, 0), (0, Kp - Tf), (0, P - P0)))
    b0p = jnp.pad(b0.reshape(G, 1, P0), ((0, 0), (0, 0), (0, P - P0)))

    # Hidden layers: block-diagonal [P, P] per (group, layer).
    wmg = wm.reshape(G, Tf, num_mid, H, H).transpose(0, 2, 1, 3, 4)
    Wm = (eye[None, None, :, None, :, None] *
          wmg[:, :, :, :, None, :]).reshape(G, num_mid, P0, P0)
    Wm = jnp.pad(Wm, ((0, 0), (0, 0), (0, P - P0), (0, P - P0)))
    bmp = bm.reshape(G, Tf, num_mid, H).transpose(0, 2, 1, 3).reshape(
        G, num_mid, 1, P0)
    bmp = jnp.pad(bmp, ((0, 0), (0, 0), (0, 0), (0, P - P0)))

    # Final layer: block-diagonal [P, P] per group.
    wlg = wl.reshape(G, Tf, H, H)
    Wl = (eye[None, :, None, :, None] *
          wlg[:, :, :, None, :]).reshape(G, P0, P0)
    Wl = jnp.pad(Wl, ((0, 0), (0, P - P0), (0, P - P0)))
    blp = jnp.pad(bl.reshape(G, 1, P0), ((0, 0), (0, 0), (0, P - P0)))

    bf16 = jnp.bfloat16
    packed = (W0.astype(jnp.float32),          # layer 0 stays f32 (precision)
              b0p.astype(act_dtype),
              Wm.astype(bf16), bmp.astype(act_dtype),
              Wl.astype(bf16), blp.astype(jnp.float32))
    meta = dict(F=F, H=H, num_mid=num_mid, Tf=Tf, G=G, P0=P0, P=P, Kp=Kp,
                act_dtype=act_dtype)
    return packed, meta


def _embedding_kernel(x_ref, w0_ref, b0_ref, wm_ref, bm_ref, wl_ref, bl_ref,
                      o_ref, *, num_mid, act_dtype):
    # One grid step = one (feature group, batch tile).  Activations are
    # lane-dense [Tb, P]; hidden/final matmul operands are bf16, bias/ReLU run
    # in act_dtype (bf16 on v6e/v7x, f32 on v5e).
    act_dtype = jnp.dtype(act_dtype)
    mm_out = jnp.float32 if act_dtype == jnp.float32 else jnp.bfloat16

    # Layer 0: f32 operands (Kp-wide contraction is tiny) -> no input quantization.
    h = jnp.dot(x_ref[0], w0_ref[0], preferred_element_type=jnp.float32)
    h = jnp.maximum(h.astype(act_dtype) + b0_ref[0], 0)
    # TODO(synk): nn.Dropout is identity in eval mode; training-mode masking
    # (prng + rescale) is not implemented here.

    # Static unroll; switch to lax.fori_loop with dynamic wm_ref[0, l] indexing
    # if num_mid grows large (>= ~8) to bound live intermediate ranges.
    for l in range(num_mid):
        h = jnp.dot(h.astype(jnp.bfloat16), wm_ref[0, l],
                    preferred_element_type=mm_out)
        h = jnp.maximum(h + bm_ref[0, l], 0)

    out = jnp.dot(h.astype(jnp.bfloat16), wl_ref[0],
                  preferred_element_type=jnp.float32)
    o_ref[...] = (out + bl_ref[0]).astype(o_ref.dtype)


def embedding_forward_packed(x, packed, *, F, H, num_mid, Tf, G, P0, P, Kp,
                             act_dtype, out_dtype=jnp.float32, tb_cap=4096):
    """x: [B, F] float32, packed from pack_embedding_params. Returns [B, F, H]."""
    B = x.shape[0]
    Tb = _pick_tb(B, G, tb_cap=tb_cap)
    nb = pl.cdiv(B, Tb)                 # robust to non-dividing B
    B_pad = nb * Tb

    # x: [B, F] -> [G, B_pad, Kp]  (group-major; tiny transpose, zero padding).
    x_g = x.reshape(B, G, Tf).transpose(1, 0, 2)
    if (B_pad - B) or (Kp - Tf):
        x_g = jnp.pad(x_g, ((0, 0), (0, B_pad - B), (0, Kp - Tf)))

    W0p, b0p, Wmp, bmp, Wlp, blp = packed
    kernel = functools.partial(_embedding_kernel, num_mid=num_mid,
                               act_dtype=act_dtype)

    # Grid: (feature groups, batch tiles).  Weight index_maps depend only on
    # the group axis, so weights stay VMEM-resident across the batch loop.
    # (For very large num_mid/P on v7x, pipeline_mode=pl.Buffered(1) on the six
    # weight/bias specs would drop their redundant double buffers.)
    out_flat = pl.pallas_call(
        kernel,
        out_shape=jax.ShapeDtypeStruct((B_pad, G * P), out_dtype),
        grid_spec=pltpu.PrefetchScalarGridSpec(
            num_scalar_prefetch=0,
            grid=(G, nb),
            in_specs=[
                pl.BlockSpec((1, Tb, Kp), lambda g, b: (g, b, 0)),            # x
                pl.BlockSpec((1, Kp, P), lambda g, b: (g, 0, 0)),             # W0
                pl.BlockSpec((1, 1, P), lambda g, b: (g, 0, 0)),              # b0
                pl.BlockSpec((1, num_mid, P, P), lambda g, b: (g, 0, 0, 0)),  # Wmid
                pl.BlockSpec((1, num_mid, 1, P), lambda g, b: (g, 0, 0, 0)),  # bmid
                pl.BlockSpec((1, P, P), lambda g, b: (g, 0, 0)),              # Wlast
                pl.BlockSpec((1, 1, P), lambda g, b: (g, 0, 0)),              # blast
            ],
            # Lane-dense output slab written directly in target row-major layout.
            out_specs=pl.BlockSpec((Tb, P), lambda g, b: (b, g)),
        ),
        compiler_params=pltpu.CompilerParams(
            dimension_semantics=("parallel", "parallel")),
    )(x_g, W0p, b0p, Wmp, bmp, Wlp, blp)

    # Drop batch padding and any per-group lane padding; reshape is free.
    out = out_flat[:B].reshape(B, G, P)[:, :, :P0].reshape(B, F, H)
    return out


def make_embedding_forward(params, *, act_dtype=None, out_dtype=jnp.float32,
                           tb_cap=4096):
    """Pack weights ONCE (outside the per-call path) and return a jitted forward.

    Set out_dtype=jnp.bfloat16 to halve the dominant HBM write traffic if the
    consumer accepts bf16 embeddings (kept f32 here to match the PyTorch spec).
    """
    if act_dtype is None:
        act_dtype = _default_act_dtype()
    packed, meta = pack_embedding_params(params, act_dtype=act_dtype)
    packed = tuple(jax.block_until_ready(p) for p in packed)  # materialize once
    fwd = jax.jit(functools.partial(embedding_forward_packed, **meta,
                                    out_dtype=out_dtype, tb_cap=tb_cap))
    return lambda x: fwd(x, packed)


def init_params(key, F, H, num_layers):
    """Deterministic synthetic parameters (weights stored as [in, out])."""
    assert num_layers >= 3, "this script instantiates num_layers - 2 >= 1 mid layers"
    num_mid = num_layers - 2
    ks = jax.random.split(key, 6)
    scale = 0.1
    w0 = scale * jax.random.normal(ks[0], (F, 1, H), jnp.float32)
    b0 = scale * jax.random.normal(ks[1], (F, 1, H), jnp.float32)
    wm = scale * jax.random.normal(ks[2], (F, num_mid, H, H), jnp.float32)
    bm = scale * jax.random.normal(ks[3], (F, num_mid, 1, H), jnp.float32)
    wl = scale * jax.random.normal(ks[4], (F, H, H), jnp.float32)
    bl = scale * jax.random.normal(ks[5], (F, 1, H), jnp.float32)
    return w0, b0, wm, bm, wl, bl


def reference_forward(x, params):
    """Pure-JAX f32 reference of the PyTorch forward (dropout = identity)."""
    w0, b0, wm, bm, wl, bl = params
    B, F = x.shape
    num_mid = wm.shape[1]
    outs = []
    for i in range(F):
        h = jnp.maximum(x[:, i:i + 1] @ w0[i] + b0[i], 0.0)
        for l in range(num_mid):
            h = jnp.maximum(h @ wm[i, l] + bm[i, l], 0.0)
        outs.append((h @ wl[i] + bl[i])[:, None, :])
    return jnp.concatenate(outs, axis=1)


if __name__ == "__main__":
    # Embedding(input_size=4, output_size=4, hidden_size=32, num_layers=3,
    #           dropout_rate=0.1)
    B, F, H, NUM_LAYERS = 8, 4, 32, 3

    key = jax.random.PRNGKey(0)
    kx, kp = jax.random.split(key)
    x = jax.random.normal(kx, (B, F), jnp.float32)
    params = init_params(kp, F, H, NUM_LAYERS)

    fwd = make_embedding_forward(params)     # packs weights once, jits forward
    out = jax.block_until_ready(fwd(x))

    ref = reference_forward(x, params)
    assert out.shape == (B, F, H)
    # bf16 operands on the [P,P] layers (f32 layer 0, f32 accumulation) ->
    # loosened tolerance vs the pure-f32 reference.
    err = float(jnp.max(jnp.abs(out - ref)))
    assert err < 2e-2, err

    print("KERNEL_OK")
</pallas_src>

<mosaic_0001>
module attributes {stable_mosaic.version = 11 : i64} {
  func.func @_embedding_kernel(%arg0: i32, %arg1: i32, %arg2: memref<1x8x8xf32, #tpu.memory_space<vmem>>, %arg3: memref<1x8x128xf32, #tpu.memory_space<vmem>>, %arg4: memref<1x1x128xf32, #tpu.memory_space<vmem>>, %arg5: memref<1x1x128x128xbf16, #tpu.memory_space<vmem>>, %arg6: memref<1x1x1x128xf32, #tpu.memory_space<vmem>>, %arg7: memref<1x128x128xbf16, #tpu.memory_space<vmem>>, %arg8: memref<1x1x128xf32, #tpu.memory_space<vmem>>, %arg9: memref<8x128xf32, #tpu.memory_space<vmem>>) attributes {dimension_semantics = [#tpu.dimension_semantics<parallel>, #tpu.dimension_semantics<parallel>], iteration_bounds = array<i64: 1, 1>, scalar_prefetch = 0 : i64, scratch_operands = 0 : i64, tpu.core_type = #tpu.core_type<tc>, window_params = [{transform_indices = @transform_0, window_bounds = array<i64: 1, 8, 8>}, {transform_indices = @transform_1, window_bounds = array<i64: 1, 8, 128>}, {transform_indices = @transform_2, window_bounds = array<i64: 1, 1, 128>}, {transform_indices = @transform_3, window_bounds = array<i64: 1, 1, 128, 128>}, {transform_indices = @transform_4, window_bounds = array<i64: 1, 1, 1, 128>}, {transform_indices = @transform_5, window_bounds = array<i64: 1, 128, 128>}, {transform_indices = @transform_6, window_bounds = array<i64: 1, 1, 128>}, {transform_indices = @transform_7, window_bounds = array<i64: 8, 128>}]} {
    %c0 = arith.constant 0 : index
    %c0_0 = arith.constant 0 : index
    %c0_1 = arith.constant 0 : index
    %0 = vector.load %arg2[%c0, %c0_0, %c0_1] : memref<1x8x8xf32, #tpu.memory_space<vmem>>, vector<1x8x8xf32>
    %1 = vector.shape_cast %0 : vector<1x8x8xf32> to vector<8x8xf32>
    %c0_2 = arith.constant 0 : index
    %c0_3 = arith.constant 0 : index
    %c0_4 = arith.constant 0 : index
    %2 = vector.load %arg3[%c0_2, %c0_3, %c0_4] : memref<1x8x128xf32, #tpu.memory_space<vmem>>, vector<1x8x128xf32>
    %3 = vector.shape_cast %2 : vector<1x8x128xf32> to vector<8x128xf32>
    %cst = arith.constant dense<0.000000e+00> : vector<8x128xf32>
    %4 = tpu.matmul %1, %3, %cst {dimension_numbers = #tpu.dot_dimension_numbers<[1], [0], [0], [1], [0, 0, 1, 1], [], []>} : vector<8x8xf32>, vector<8x128xf32>, vector<8x128xf32> -> vector<8x128xf32>
    %c0_5 = arith.constant 0 : index
    %c0_6 = arith.constant 0 : index
    %c0_7 = arith.constant 0 : index
    %5 = vector.load %arg4[%c0_5, %c0_6, %c0_7] : memref<1x1x128xf32, #tpu.memory_space<vmem>>, vector<1x1x128xf32>
    %6 = vector.shape_cast %5 : vector<1x1x128xf32> to vector<1x128xf32>
    %7 = vector.broadcast %6 : vector<1x128xf32> to vector<8x128xf32>
    %8 = arith.addf %4, %7 : vector<8x128xf32>
    %cst_8 = arith.constant 0.000000e+00 : f32
    %9 = vector.broadcast %cst_8 : f32 to vector<8x128xf32>
    %10 = arith.maximumf %8, %9 : vector<8x128xf32>
    %11 = arith.truncf %10 : vector<8x128xf32> to vector<8x128xbf16>
    %c0_9 = arith.constant 0 : index
    %c0_10 = arith.constant 0 : index
    %c0_11 = arith.constant 0 : index
    %c0_12 = arith.constant 0 : index
    %12 = vector.load %arg5[%c0_9, %c0_10, %c0_11, %c0_12] : memref<1x1x128x128xbf16, #tpu.memory_space<vmem>>, vector<1x1x128x128xbf16>
    %13 = vector.shape_cast %12 : vector<1x1x128x128xbf16> to vector<128x128xbf16>
    %cst_13 = arith.constant dense<0.000000e+00> : vector<8x128xf32>
    %14 = tpu.matmul %11, %13, %cst_13 {dimension_numbers = #tpu.dot_dimension_numbers<[1], [0], [0], [1], [0, 0, 1, 1], [], []>} : vector<8x128xbf16>, vector<128x128xbf16>, vector<8x128xf32> -> vector<8x128xf32>
    %c0_14 = arith.constant 0 : index
    %c0_15 = arith.constant 0 : index
    %c0_16 = arith.constant 0 : index
    %c0_17 = arith.constant 0 : index
    %15 = vector.load %arg6[%c0_14, %c0_15, %c0_16, %c0_17] : memref<1x1x1x128xf32, #tpu.memory_space<vmem>>, vector<1x1x1x128xf32>
    %16 = vector.shape_cast %15 : vector<1x1x1x128xf32> to vector<1x128xf32>
    %17 = vector.broadcast %16 : vector<1x128xf32> to vector<8x128xf32>
    %18 = arith.addf %14, %17 : vector<8x128xf32>
    %cst_18 = arith.constant 0.000000e+00 : f32
    %19 = vector.broadcast %cst_18 : f32 to vector<8x128xf32>
    %20 = arith.maximumf %18, %19 : vector<8x128xf32>
    %21 = arith.truncf %20 : vector<8x128xf32> to vector<8x128xbf16>
    %c0_19 = arith.constant 0 : index
    %c0_20 = arith.constant 0 : index
    %c0_21 = arith.constant 0 : index
    %22 = vector.load %arg7[%c0_19, %c0_20, %c0_21] : memref<1x128x128xbf16, #tpu.memory_space<vmem>>, vector<1x128x128xbf16>
    %23 = vector.shape_cast %22 : vector<1x128x128xbf16> to vector<128x128xbf16>
    %cst_22 = arith.constant dense<0.000000e+00> : vector<8x128xf32>
    %24 = tpu.matmul %21, %23, %cst_22 {dimension_numbers = #tpu.dot_dimension_numbers<[1], [0], [0], [1], [0, 0, 1, 1], [], []>} : vector<8x128xbf16>, vector<128x128xbf16>, vector<8x128xf32> -> vector<8x128xf32>
    %c0_23 = arith.constant 0 : index
    %c0_24 = arith.constant 0 : index
    %c0_25 = arith.constant 0 : index
    %25 = vector.load %arg8[%c0_23, %c0_24, %c0_25] : memref<1x1x128xf32, #tpu.memory_space<vmem>>, vector<1x1x128xf32>
    %26 = vector.shape_cast %25 : vector<1x1x128xf32> to vector<1x128xf32>
    %27 = vector.broadcast %26 : vector<1x128xf32> to vector<8x128xf32>
    %28 = arith.addf %24, %27 : vector<8x128xf32>
    %c0_26 = arith.constant 0 : index
    %c0_27 = arith.constant 0 : index
    %29 = vector.load %arg9[%c0_26, %c0_27] : memref<8x128xf32, #tpu.memory_space<vmem>>, vector<8x128xf32>
    tpu.vector_store %arg9[%c0_26, %c0_27], %28 {strides = array<i32>} : memref<8x128xf32, #tpu.memory_space<vmem>>, vector<8x128xf32>,
    return
  }
  func.func @transform_0(%arg0: i32, %arg1: i32) -> (i32, i32, i32) {
    %c0_i32 = arith.constant 0 : i32
    %c0_i32_0 = arith.constant 0 : i32
    return %arg0, %arg1, %c0_i32 : i32, i32, i32
  }
  func.func @transform_1(%arg0: i32, %arg1: i32) -> (i32, i32, i32) {
    %c0_i32 = arith.constant 0 : i32
    %c0_i32_0 = arith.constant 0 : i32
    %c0_i32_1 = arith.constant 0 : i32
    return %arg0, %c0_i32, %c0_i32_0 : i32, i32, i32
  }
  func.func @transform_2(%arg0: i32, %arg1: i32) -> (i32, i32, i32) {
    %c0_i32 = arith.constant 0 : i32
    %c0_i32_0 = arith.constant 0 : i32
    %c0_i32_1 = arith.constant 0 : i32
    return %arg0, %c0_i32, %c0_i32_0 : i32, i32, i32
  }
  func.func @transform_3(%arg0: i32, %arg1: i32) -> (i32, i32, i32, i32) {
    %c0_i32 = arith.constant 0 : i32
    %c0_i32_0 = arith.constant 0 : i32
    %c0_i32_1 = arith.constant 0 : i32
    %c0_i32_2 = arith.constant 0 : i32
    return %arg0, %c0_i32, %c0_i32_0, %c0_i32_1 : i32, i32, i32, i32
  }
  func.func @transform_4(%arg0: i32, %arg1: i32) -> (i32, i32, i32, i32) {
    %c0_i32 = arith.constant 0 : i32
    %c0_i32_0 = arith.constant 0 : i32
    %c0_i32_1 = arith.constant 0 : i32
    %c0_i32_2 = arith.constant 0 : i32
    return %arg0, %c0_i32, %c0_i32_0, %c0_i32_1 : i32, i32, i32, i32
  }
  func.func @transform_5(%arg0: i32, %arg1: i32) -> (i32, i32, i32) {
    %c0_i32 = arith.constant 0 : i32
    %c0_i32_0 = arith.constant 0 : i32
    %c0_i32_1 = arith.constant 0 : i32
    return %arg0, %c0_i32, %c0_i32_0 : i32, i32, i32
  }
  func.func @transform_6(%arg0: i32, %arg1: i32) -> (i32, i32, i32) {
    %c0_i32 = arith.constant 0 : i32
    %c0_i32_0 = arith.constant 0 : i32
    %c0_i32_1 = arith.constant 0 : i32
    return %arg0, %c0_i32, %c0_i32_0 : i32, i32, i32
  }
  func.func @transform_7(%arg0: i32, %arg1: i32) -> (i32, i32) {
    %c0_i32 = arith.constant 0 : i32
    return %arg1, %arg0 : i32, i32
  }
}

</mosaic_0001>

<llo_original>
// kernel: embedding_forward_packed.1
$region0: #{embedding_forward_packed.1}
  #allocation0 [shape = 'u32[]', space=smem, size = 0x4, offset = 0x4, fixed_abs, tag = 'smem constant byte address 0x4 - core index']
  #allocation1 [shape = 'u32[144,128]{1,0:T(1,128)}', space=vmem, size = 0x12000, scoped, tag = 'internal scratch']
  %s0 = inlined_call_operand.vmem [shape: f32[1,8,8], index: 0, kind: input, shape index: {}]
  %s1 = inlined_call_operand.vmem [shape: f32[1,8,128], index: 1, kind: input, shape index: {}]
  %s2 = inlined_call_operand.vmem [shape: f32[1,1,128], index: 2, kind: input, shape index: {}]
  %s3 = inlined_call_operand.hbm [shape: bf16[1,1,128,128], index: 3, kind: input, shape index: {}]
  %s4 = inlined_call_operand.vmem [shape: f32[1,1,1,128], index: 4, kind: input, shape index: {}]
  %s5 = inlined_call_operand.hbm [shape: bf16[1,128,128], index: 5, kind: input, shape index: {}]
  %s6 = inlined_call_operand.vmem [shape: f32[1,1,128], index: 6, kind: input, shape index: {}]
  %s7 = inlined_call_operand.vmem [shape: f32[8,128], index: 7, kind: output, shape index: {}]
  %s8 = sld [smem:[#allocation0]]
  $region46: #{embedding_forward_packed.1} parent=0
    _
  %s10 = ssub.s32 1, %s8
  %s11 = scalar_select 0, %s10, %s8
  $region1: #{embedding_forward_packed.1} parent=0
    #allocation2 [shape = 'u8[32768]{0}', space=vmem, size = 0x8000, scoped, tag = 'input window, operand 3, single buffered']
    #allocation3 [shape = 's32[1]{0}', space=sflag, size = 0x4, scoped, tag = 'scoped memory for embedding_forward_packed.1']
    #allocation4 [shape = 'u8[32768]{0}', space=vmem, size = 0x8000, scoped, tag = 'input window, operand 5, single buffered']
    #allocation5 [shape = 's32[1]{0}', space=sflag, size = 0x4, scoped, tag = 'scoped memory for embedding_forward_packed.1']
    %12 = vsyncpa [#allocation3], 0
    %13 = vsyncpa [#allocation5], 0
    // Predicated region
    $region2: #{embedding_forward_packed.1} parent=1 // pred_check
      _
    $region3: #{embedding_forward_packed.1} parent=1 // pred_check_branch
      %15 = sbr.rel (0) target = $region5
    $region4: #{embedding_forward_packed.1} parent=1 // pred_region
      _
    $region5: #{embedding_forward_packed.1} parent=1 // pred_fallthru
      _
    // Predicated region
    $region6: #{embedding_forward_packed.1} parent=1 // pred_check
      _
    $region7: #{embedding_forward_packed.1} parent=1 // pred_check_branch
      %17 = sbr.rel (0) target = $region9
    $region8: #{embedding_forward_packed.1} parent=1 // pred_region
      _
    $region9: #{embedding_forward_packed.1} parent=1 // pred_fallthru
      _
    // Predicated region
    $region10: #{embedding_forward_packed.1} parent=1 // pred_check
      _
    $region11: #{embedding_forward_packed.1} parent=1 // pred_check_branch
      %19 = sbr.rel (0) target = $region13
    $region12: #{embedding_forward_packed.1} parent=1 // pred_region
      _
    $region13: #{embedding_forward_packed.1} parent=1 // pred_fallthru
      _
    // Predicated region
    $region14: #{embedding_forward_packed.1} parent=1 // pred_check
      _
    $region15: #{embedding_forward_packed.1} parent=1 // pred_check_branch
      %21 = sbr.rel (0) target = $region17
    $region16: #{embedding_forward_packed.1} parent=1 // pred_region
      %s23 = ssub.s32 1024, 1024
      %24 = vsyncadd [#allocation3], %s23
      %s25 = sshll.u32 [#allocation2], 4
      %s26 = int_to_ptr.vmem [resolvable:$true] %s25
      %31 = dma.hbm_to_vmem [thread:$0]  %s3, 1024, %s26, [#allocation3], 64, 64, 4
    $region17: #{embedding_forward_packed.1} parent=1 // pred_fallthru
      _
    // Predicated region
    $region18: #{embedding_forward_packed.1} parent=1 // pred_check
      _
    $region19: #{embedding_forward_packed.1} parent=1 // pred_check_branch
      %33 = sbr.rel (0) target = $region21
    $region20: #{embedding_forward_packed.1} parent=1 // pred_region
      _
    $region21: #{embedding_forward_packed.1} parent=1 // pred_fallthru
      _
    // Predicated region
    $region22: #{embedding_forward_packed.1} parent=1 // pred_check
      _
    $region23: #{embedding_forward_packed.1} parent=1 // pred_check_branch
      %35 = sbr.rel (0) target = $region25
    $region24: #{embedding_forward_packed.1} parent=1 // pred_region
      %s37 = ssub.s32 1024, 1024
      %38 = vsyncadd [#allocation5], %s37
      %s39 = sshll.u32 [#allocation4], 4
      %s40 = int_to_ptr.vmem [resolvable:$true] %s39
      %45 = dma.hbm_to_vmem [thread:$0]  %s5, 1024, %s40, [#allocation5], 64, 64, 4
    $region25: #{embedding_forward_packed.1} parent=1 // pred_fallthru
      _
    // Predicated region
    $region26: #{embedding_forward_packed.1} parent=1 // pred_check
      _
    $region27: #{embedding_forward_packed.1} parent=1 // pred_check_branch
      %47 = sbr.rel (0) target = $region29
    $region28: #{embedding_forward_packed.1} parent=1 // pred_region
      _
    $region29: #{embedding_forward_packed.1} parent=1 // pred_fallthru
      _
    // Predicated region
    $region30: #{embedding_forward_packed.1} parent=1 // pred_check
      _
    $region31: #{embedding_forward_packed.1} parent=1 // pred_check_branch
      %49 = sbr.rel (0) target = $region33
    $region32: #{embedding_forward_packed.1} parent=1 // pred_region
      %50 = dma.done [#allocation3], 1024
    $region33: #{embedding_forward_packed.1} parent=1 // pred_fallthru
      _
    // Predicated region
    $region34: #{embedding_forward_packed.1} parent=1 // pred_check
      _
    $region35: #{embedding_forward_packed.1} parent=1 // pred_check_branch
      %52 = sbr.rel (0) target = $region37
    $region36: #{embedding_forward_packed.1} parent=1 // pred_region
      %53 = dma.done [#allocation5], 1024
    $region37: #{embedding_forward_packed.1} parent=1 // pred_fallthru
      _
    %v55 = vld [vmem:[%s0] sm:$0xff]
    %v56 = vld [vmem:[%s1] sm:$0xff]
    %v57 = vld [vmem:[%s2] sm:$0x1]
    %v59 = vlaneseq
    %v60 = vshrl.u32 %v59, 7
    %v61 = vsub.s32 0, %v60
    %v62 = vrot.slane %v57, %v61
    %vm64 = vcmask 64512
    %v66 = vsel %vm64, %v55, 0
    %68 = vmatprep.subr.mxu0 0.0
    %69 = vmatpush1.msra.mxu0 0.0
    %70 = vmatprep.subr.mxu0 0.0
    %71 = vmatpush1.msra.mxu0 0.0
    %72 = vmatprep.subr.mxu0 0.0
    %73 = vmatpush1.msra.mxu0 0.0
    %74 = vmatprep.subr.mxu0 0.0
    %75 = vmatpush1.msra.mxu0 0.0
    %76 = vmatprep.subr.mxu0 0.0
    %77 = vmatpush1.msra.mxu0 0.0
    %78 = vmatprep.subr.mxu0 0.0
    %79 = vmatpush1.msra.mxu0 0.0
    %80 = vmatprep.subr.mxu0 0.0
    %81 = vmatpush1.msra.mxu0 0.0
    %82 = vmatprep.subr.mxu0 0.0
    %83 = vmatpush1.msra.mxu0 0.0
    %84 = vmatprep.subr.mxu0 0.0
    %85 = vmatpush1.msra.mxu0 0.0
    %86 = vmatprep.subr.mxu0 0.0
    %87 = vmatpush1.msra.mxu0 0.0
    %88 = vmatprep.subr.mxu0 0.0
    %89 = vmatpush1.msra.mxu0 0.0
    %90 = vmatprep.subr.mxu0 0.0
    %91 = vmatpush1.msra.mxu0 0.0
    %92 = vmatprep.subr.mxu0 0.0
    %93 = vmatpush1.msra.mxu0 0.0
    %94 = vmatprep.subr.mxu0 0.0
    %95 = vmatpush1.msra.mxu0 0.0
    %96 = vmatprep.subr.mxu0 0.0
    %97 = vmatpush1.msra.mxu0 0.0
    %98 = vmatprep.subr.mxu0 0.0
    %99 = vmatpush1.msra.mxu0 %v56
    %100 = vmatprep.subr.mxu0 0.0
    %101 = vmatpush2.msra.mxu0 0.0
    %102 = vmatprep.subr.mxu0 0.0
    %103 = vmatpush2.msra.mxu0 0.0
    %104 = vmatprep.subr.mxu0 0.0
    %105 = vmatpush2.msra.mxu0 0.0
    %106 = vmatprep.subr.mxu0 0.0
    %107 = vmatpush2.msra.mxu0 0.0
    %108 = vmatprep.subr.mxu0 0.0
    %109 = vmatpush2.msra.mxu0 0.0
    %110 = vmatprep.subr.mxu0 0.0
    %111 = vmatpush2.msra.mxu0 0.0
    %112 = vmatprep.subr.mxu0 0.0
    %113 = vmatpush2.msra.mxu0 0.0
    %114 = vmatprep.subr.mxu0 0.0
    %115 = vmatpush2.msra.mxu0 0.0
    %116 = vmatprep.subr.mxu0 0.0
    %117 = vmatpush2.msra.mxu0 0.0
    %118 = vmatprep.subr.mxu0 0.0
    %119 = vmatpush2.msra.mxu0 0.0
    %120 = vmatprep.subr.mxu0 0.0
    %121 = vmatpush2.msra.mxu0 0.0
    %122 = vmatprep.subr.mxu0 0.0
    %123 = vmatpush2.msra.mxu0 0.0
    %124 = vmatprep.subr.mxu0 0.0
    %125 = vmatpush2.msra.mxu0 0.0
    %126 = vmatprep.subr.mxu0 0.0
    %127 = vmatpush2.msra.mxu0 0.0
    %128 = vmatprep.subr.mxu0 0.0
    %129 = vmatpush2.msra.mxu0 0.0
    %130 = vmatprep.subr.mxu0 0.0
    %131 = vmatpush2.msra.mxu0 0.0
    %132 = vmatprep.mubr.f32.mxu0 0.0
    %133 = vmatmul.mubr.f32.gmra.mxu0 %v66
    %v134 = vpop.f32.mrf.mxu0
    %v135 = vadd.f32 %v62, %v134
    %v136 = vpop.f32.mrf.mxu0
    %137 = vdwg.mxu0
    %v138 = vmax.f32 %v135, 0.0
    %v139 = vpack.c.bf16 %v138, %v138
    %v140 = vld [vmem:[#allocation2] sm:$0xf]
    %v141 = vld [vmem:[#allocation2 + $0x4] sm:$0xf]
    %v142 = vld [vmem:[#allocation2 + $0x8] sm:$0xf]
    %v143 = vld [vmem:[#allocation2 + $0xc] sm:$0xf]
    %v144 = vld [vmem:[#allocation2 + $0x10] sm:$0xf]
    %v145 = vld [vmem:[#allocation2 + $0x14] sm:$0xf]
    %v146 = vld [vmem:[#allocation2 + $0x18] sm:$0xf]
    %v147 = vld [vmem:[#allocation2 + $0x1c] sm:$0xf]
    %v148 = vld [vmem:[#allocation2 + $0x20] sm:$0xf]
    %v149 = vld [vmem:[#allocation2 + $0x24] sm:$0xf]
    %v150 = vld [vmem:[#allocation2 + $0x28] sm:$0xf]
    %v151 = vld [vmem:[#allocation2 + $0x2c] sm:$0xf]
    %v152 = vld [vmem:[#allocation2 + $0x30] sm:$0xf]
    %v153 = vld [vmem:[#allocation2 + $0x34] sm:$0xf]
    %v154 = vld [vmem:[#allocation2 + $0x38] sm:$0xf]
    %v155 = vld [vmem:[#allocation2 + $0x3c] sm:$0xf]
    %v156 = vld [vmem:[%s4] sm:$0x1]
    %v158 = vlaneseq
    %v159 = vshrl.u32 %v158, 7
    %v160 = vsub.s32 0, %v159
    %v161 = vrot.slane %v156, %v160
    %v179 = vunpack.c.l.b16 %v140
    %v180 = vunpack.c.l.b16 %v141
    %v181 = vunpack.c.l.b16 %v142
    %v182 = vunpack.c.l.b16 %v143
    %v183 = vunpack.c.l.b16 %v144
    %v184 = vunpack.c.l.b16 %v145
    %v185 = vunpack.c.l.b16 %v146
    %v186 = vunpack.c.l.b16 %v147
    %v187 = vunpack.c.l.b16 %v148
    %v188 = vunpack.c.l.b16 %v149
    %v189 = vunpack.c.l.b16 %v150
    %v190 = vunpack.c.l.b16 %v151
    %v191 = vunpack.c.l.b16 %v152
    %v192 = vunpack.c.l.b16 %v153
    %v193 = vunpack.c.l.b16 %v154
    %v194 = vunpack.c.l.b16 %v155
    %v195 = vpack.c.b16 %v180, %v179
    %v196 = vpack.c.b16 %v182, %v181
    %v197 = vpack.c.b16 %v184, %v183
    %v198 = vpack.c.b16 %v186, %v185
    %v199 = vpack.c.b16 %v188, %v187
    %v200 = vpack.c.b16 %v190, %v189
    %v201 = vpack.c.b16 %v192, %v191
    %v202 = vpack.c.b16 %v194, %v193
    %211 = vmatprep.subr.bf16.mxu0 0
    %212 = vmatpush1.bf16.msra.mxu0 %v202
    %213 = vmatprep.subr.bf16.mxu0 0
    %214 = vmatpush1.bf16.msra.mxu0 %v201
    %215 = vmatprep.subr.bf16.mxu0 0
    %216 = vmatpush1.bf16.msra.mxu0 %v200
    %217 = vmatprep.subr.bf16.mxu0 0
    %218 = vmatpush1.bf16.msra.mxu0 %v199
    %219 = vmatprep.subr.bf16.mxu0 0
    %220 = vmatpush1.bf16.msra.mxu0 %v198
    %221 = vmatprep.subr.bf16.mxu0 0
    %222 = vmatpush1.bf16.msra.mxu0 %v197
    %223 = vmatprep.subr.bf16.mxu0 0
    %224 = vmatpush1.bf16.msra.mxu0 %v196
    %225 = vmatprep.subr.bf16.mxu0 0
    %226 = vmatpush1.bf16.msra.mxu0 %v195
    %227 = vmatprep.subr.bf16.mxu0 0
    %228 = vmatpush2.bf16.msra.mxu0 0
    %229 = vmatprep.subr.bf16.mxu0 0
    %230 = vmatpush2.bf16.msra.mxu0 0
    %231 = vmatprep.subr.bf16.mxu0 0
    %232 = vmatpush2.bf16.msra.mxu0 0
    %233 = vmatprep.subr.bf16.mxu0 0
    %234 = vmatpush2.bf16.msra.mxu0 0
    %235 = vmatprep.subr.bf16.mxu0 0
    %236 = vmatpush2.bf16.msra.mxu0 0
    %237 = vmatprep.subr.bf16.mxu0 0
    %238 = vmatpush2.bf16.msra.mxu0 0
    %239 = vmatprep.subr.bf16.mxu0 0
    %240 = vmatpush2.bf16.msra.mxu0 0
    %241 = vmatprep.subr.bf16.mxu0 0
    %242 = vmatpush2.bf16.msra.mxu0 0
    %243 = vmatprep.mubr.bf16.mxu0 0
    %244 = vmatmul.mubr.bf16.gmra.mxu0 %v139
    %v245 = vpop.f32.mrf.mxu0
    %v246 = vadd.f32 %v161, %v245
    %v247 = vpop.f32.mrf.mxu0
    %v248 = vpop.f32.mrf.mxu0
    %v249 = vpop.f32.mrf.mxu0
    %250 = vdwg.mxu0
    %v251 = vmax.f32 %v246, 0.0
    %v252 = vpack.c.bf16 %v251, %v251
    %v253 = vld [vmem:[#allocation4] sm:$0xf]
    %v254 = vld [vmem:[#allocation4 + $0x4] sm:$0xf]
    %v255 = vld [vmem:[#allocation4 + $0x8] sm:$0xf]
    %v256 = vld [vmem:[#allocation4 + $0xc] sm:$0xf]
    %v257 = vld [vmem:[#allocation4 + $0x10] sm:$0xf]
    %v258 = vld [vmem:[#allocation4 + $0x14] sm:$0xf]
    %v259 = vld [vmem:[#allocation4 + $0x18] sm:$0xf]
    %v260 = vld [vmem:[#allocation4 + $0x1c] sm:$0xf]
    %v261 = vld [vmem:[#allocation4 + $0x20] sm:$0xf]
    %v262 = vld [vmem:[#allocation4 + $0x24] sm:$0xf]
    %v263 = vld [vmem:[#allocation4 + $0x28] sm:$0xf]
    %v264 = vld [vmem:[#allocation4 + $0x2c] sm:$0xf]
    %v265 = vld [vmem:[#allocation4 + $0x30] sm:$0xf]
    %v266 = vld [vmem:[#allocation4 + $0x34] sm:$0xf]
    %v267 = vld [vmem:[#allocation4 + $0x38] sm:$0xf]
    %v268 = vld [vmem:[#allocation4 + $0x3c] sm:$0xf]
    %v269 = vld [vmem:[%s6] sm:$0x1]
    %v271 = vlaneseq
    %v272 = vshrl.u32 %v271, 7
    %v273 = vsub.s32 0, %v272
    %v274 = vrot.slane %v269, %v273
    %v292 = vunpack.c.l.b16 %v253
    %v293 = vunpack.c.l.b16 %v254
    %v294 = vunpack.c.l.b16 %v255
    %v295 = vunpack.c.l.b16 %v256
    %v296 = vunpack.c.l.b16 %v257
    %v297 = vunpack.c.l.b16 %v258
    %v298 = vunpack.c.l.b16 %v259
    %v299 = vunpack.c.l.b16 %v260
    %v300 = vunpack.c.l.b16 %v261
    %v301 = vunpack.c.l.b16 %v262
    %v302 = vunpack.c.l.b16 %v263
    %v303 = vunpack.c.l.b16 %v264
    %v304 = vunpack.c.l.b16 %v265
    %v305 = vunpack.c.l.b16 %v266
    %v306 = vunpack.c.l.b16 %v267
    %v307 = vunpack.c.l.b16 %v268
    %v308 = vpack.c.b16 %v293, %v292
    %v309 = vpack.c.b16 %v295, %v294
    %v310 = vpack.c.b16 %v297, %v296
    %v311 = vpack.c.b16 %v299, %v298
    %v312 = vpack.c.b16 %v301, %v300
    %v313 = vpack.c.b16 %v303, %v302
    %v314 = vpack.c.b16 %v305, %v304
    %v315 = vpack.c.b16 %v307, %v306
    %324 = vmatprep.subr.bf16.mxu0 0
    %325 = vmatpush1.bf16.msra.mxu0 %v315
    %326 = vmatprep.subr.bf16.mxu0 0
    %327 = vmatpush1.bf16.msra.mxu0 %v314
    %328 = vmatprep.subr.bf16.mxu0 0
    %329 = vmatpush1.bf16.msra.mxu0 %v313
    %330 = vmatprep.subr.bf16.mxu0 0
    %331 = vmatpush1.bf16.msra.mxu0 %v312
    %332 = vmatprep.subr.bf16.mxu0 0
    %333 = vmatpush1.bf16.msra.mxu0 %v311
    %334 = vmatprep.subr.bf16.mxu0 0
    %335 = vmatpush1.bf16.msra.mxu0 %v310
    %336 = vmatprep.subr.bf16.mxu0 0
    %337 = vmatpush1.bf16.msra.mxu0 %v309
    %338 = vmatprep.subr.bf16.mxu0 0
    %339 = vmatpush1.bf16.msra.mxu0 %v308
    %340 = vmatprep.subr.bf16.mxu0 0
    %341 = vmatpush2.bf16.msra.mxu0 0
    %342 = vmatprep.subr.bf16.mxu0 0
    %343 = vmatpush2.bf16.msra.mxu0 0
    %344 = vmatprep.subr.bf16.mxu0 0
    %345 = vmatpush2.bf16.msra.mxu0 0
    %346 = vmatprep.subr.bf16.mxu0 0
    %347 = vmatpush2.bf16.msra.mxu0 0
    %348 = vmatprep.subr.bf16.mxu0 0
    %349 = vmatpush2.bf16.msra.mxu0 0
    %350 = vmatprep.subr.bf16.mxu0 0
    %351 = vmatpush2.bf16.msra.mxu0 0
    %352 = vmatprep.subr.bf16.mxu0 0
    %353 = vmatpush2.bf16.msra.mxu0 0
    %354 = vmatprep.subr.bf16.mxu0 0
    %355 = vmatpush2.bf16.msra.mxu0 0
    %356 = vmatprep.mubr.bf16.mxu0 0
    %357 = vmatmul.mubr.bf16.gmra.mxu0 %v252
    %v358 = vpop.f32.mrf.mxu0
    %v359 = vadd.f32 %v274, %v358
    %v360 = vpop.f32.mrf.mxu0
    %v361 = vpop.f32.mrf.mxu0
    %v362 = vpop.f32.mrf.mxu0
    %363 = vdwg.mxu0
    %364 = vst [vmem:[%s7] sm:$0xff] %v359
    // Predicated region
    $region38: #{embedding_forward_packed.1} parent=1 // pred_check
      _
    $region39: #{embedding_forward_packed.1} parent=1 // pred_check_branch
      %366 = sbr.rel (0) target = $region41
    $region40: #{embedding_forward_packed.1} parent=1 // pred_region
      _
    $region41: #{embedding_forward_packed.1} parent=1 // pred_fallthru
      _
    // Predicated region
    $region42: #{embedding_forward_packed.1} parent=1 // pred_check
      _
    $region43: #{embedding_forward_packed.1} parent=1 // pred_check_branch
      %368 = sbr.rel (0) target = $region45
    $region44: #{embedding_forward_packed.1} parent=1 // pred_region
      _
    $region45: #{embedding_forward_packed.1} parent=1 // pred_fallthru
      _
    %369 = vsyncpa [#allocation3], 1
    %370 = vsyncpa [#allocation5], 1

</llo_original>
